<compile_context>
chip_gen: v7x
topology: tpu7x:2x2x1
jax: 0.10.0
libtpu: 0.0.40
codegen_flags: <defaults>
</compile_context>

<pallas_src>
import functools

import jax
import jax.numpy as jnp
from jax.experimental import pallas as pl
from jax.experimental.pallas import tpu as pltpu


# ----------------------------------------------------------------------------
# Helpers
# ----------------------------------------------------------------------------
def _round_down(x: int, m: int) -> int:
    return (x // m) * m


def _round_up(x: int, m: int) -> int:
    return ((x + m - 1) // m) * m


def _sublane_multiple(dtype) -> int:
    bits = jnp.dtype(dtype).itemsize * 8
    return 8 * max(1, 32 // bits)  # f32 -> 8, bf16 -> 16, int8/fp8 -> 32


def _vmem_capacity_bytes() -> int:
    """Per-generation VMEM capacity (v5e/v6e 128 MiB, v7x 64 MiB)."""
    try:
        info = pltpu.get_tpu_info()
        for name in ("vmem_capacity_bytes", "vmem_size_bytes", "vmem_bytes"):
            v = getattr(info, name, None)
            if v:
                return int(v)
    except Exception:
        pass
    return 64 << 20  # conservative: assume the smallest (v7x-sized) VMEM


# ----------------------------------------------------------------------------
# Chomp1d: x[:, :, :-s] as a lane-dense tiled copy
# ----------------------------------------------------------------------------
def _chomp_copy_kernel(x_ref, o_ref):
    # The chomp is realised purely through the BlockSpecs: the grid never
    # visits the chomped tail, so this is just a lane-dense tile copy.
    o_ref[...] = x_ref[...]


def chomp1d(x: jax.Array, chomp_size: int, *, row_tile: int = 512,
            lane_tile: int = 2048) -> jax.Array:
    """x[:, :, :-chomp_size] for a (B, C, L) tensor, as a Pallas TPU kernel."""
    B, C, L = x.shape
    assert 0 < chomp_size < L, "chomp_size must be in (0, L)"
    L_out = L - chomp_size
    R = B * C
    itemsize = jnp.dtype(x.dtype).itemsize

    if L_out < 128:
        # Feedback: sub-128-lane outputs force masked partial stores and the
        # kernel launch costs more than letting XLA do the copy.
        return x[:, :, :L_out]

    # Collapse (B, C) -> one row axis (free metadata reshape for NCL layout).
    x2 = x.reshape(R, L)

    # Row tile: full extent (always legal) or a multiple of the sublane pack.
    sub = _sublane_multiple(x.dtype)
    row_tile = max(sub, _round_down(row_tile, sub))
    rt = R if R <= row_tile else row_tile
    n_row_blocks = pl.cdiv(R, rt)

    # Lane tile: even, 128-aligned split of L_out (~lane_tile wide) so the
    # final lane block is full (or at least a multiple of 128).
    lane_tile = max(128, _round_down(lane_tile, 128))
    n_lane = max(1, pl.cdiv(L_out, lane_tile))
    lt = min(_round_down(L_out, 128), _round_up(pl.cdiv(L_out, n_lane), 128))
    lt = max(lt, 128)

    # v7x: 2 TensorCores shard the "parallel" grid -> aim for >= 4 blocks when
    # the row axis is a single block, without over-shrinking (v5e guard).
    while n_row_blocks * pl.cdiv(L_out, lt) < 4:
        cand = max(256, _round_down(lt // 2, 128))
        if cand >= lt or rt * cand * itemsize < 128 * 1024:
            break
        lt = cand

    # Keep double-buffered (in + out) VMEM within a per-generation budget.
    vmem_cap = _vmem_capacity_bytes()
    budget = max(4 << 20, min(vmem_cap // 2 - (4 << 20), 28 << 20))
    while 4 * rt * lt * itemsize > budget and lt > 128:
        lt = max(128, _round_down(lt // 2, 128))
    while 4 * rt * lt * itemsize > budget and rt > sub:
        rt = max(sub, _round_down(rt // 2, sub))
        n_row_blocks = pl.cdiv(R, rt)

    pipelined = 4 * rt * lt * itemsize
    vmem_limit = int(min(vmem_cap // 2, 32 << 20, max(2 * pipelined, 16 << 20)))

    grid = (n_row_blocks, pl.cdiv(L_out, lt))
    cost = pl.CostEstimate(flops=0, transcendentals=0,
                           bytes_accessed=2 * R * L_out * itemsize)

    out2 = pl.pallas_call(
        _chomp_copy_kernel,
        out_shape=jax.ShapeDtypeStruct((R, L_out), x.dtype),
        grid_spec=pltpu.PrefetchScalarGridSpec(
            num_scalar_prefetch=0,
            grid=grid,
            in_specs=[pl.BlockSpec((rt, lt), lambda r, l: (r, l))],
            out_specs=pl.BlockSpec((rt, lt), lambda r, l: (r, l)),
        ),
        compiler_params=pltpu.CompilerParams(
            dimension_semantics=("parallel", "parallel"),
            vmem_limit_bytes=vmem_limit,
        ),
        cost_estimate=cost,
    )(x2)
    return out2.reshape(B, C, L_out)


# ----------------------------------------------------------------------------
# Fused causal Conv1d + Chomp1d (the conv/chomp pair inside EAAugmentedConv1d)
# ----------------------------------------------------------------------------
def _causal_conv_chomp_kernel(x_ref, w_ref, b_ref, o_ref, *, dilation, l_out):
    # x_ref: (1, Cin, L_pad)  w_ref: (K, Cout, Cin)  b_ref: (Cout, 1)
    # o_ref: (1, Cout, L_out) -- only the first L_out columns ever exist.
    k_taps = w_ref.shape[0]
    cout = w_ref.shape[1]
    acc = jnp.zeros((cout, l_out), jnp.float32)
    for j in range(k_taps):                       # small K -> unrolled
        acc = acc + jnp.dot(
            w_ref[j],
            x_ref[0, :, j * dilation:j * dilation + l_out],
            preferred_element_type=jnp.float32,
            precision=jax.lax.Precision.HIGHEST)
    o_ref[0] = (acc + b_ref[...]).astype(o_ref.dtype)


def causal_conv1d_chomped(x: jax.Array, weight: jax.Array, bias: jax.Array,
                          *, dilation: int) -> jax.Array:
    """Chomp1d(p)(Conv1d(Cin, Cout, K, dilation=d, padding=p)(x)), p=(K-1)*d.

    The chomp is fused: the output BlockSpec emits only the first L columns,
    so the chomped tail is never computed or written to HBM.
    """
    B, Cin, L = x.shape
    Cout, Cin_w, K = weight.shape
    assert Cin_w == Cin
    pad = (K - 1) * dilation
    # Left-pad only: chomped output positions never touch the right pad.
    x_pad = jnp.pad(x, ((0, 0), (0, 0), (pad, 0)))
    L_pad = L + pad
    w_t = jnp.transpose(weight, (2, 0, 1))        # tap-major: (K, Cout, Cin)
    b2 = bias.reshape(Cout, 1).astype(jnp.float32)

    kernel = functools.partial(_causal_conv_chomp_kernel,
                               dilation=dilation, l_out=L)
    cost = pl.CostEstimate(
        flops=2 * B * Cout * Cin * K * L, transcendentals=0,
        bytes_accessed=(x_pad.size + B * Cout * L) * jnp.dtype(x.dtype).itemsize)

    # TODO(synk): production version should also tile Cout and L; full-extent
    # blocks per batch are fine at these channel/length sizes.
    return pl.pallas_call(
        kernel,
        out_shape=jax.ShapeDtypeStruct((B, Cout, L), x.dtype),
        grid_spec=pltpu.PrefetchScalarGridSpec(
            num_scalar_prefetch=0,
            grid=(B,),
            in_specs=[
                pl.BlockSpec((1, Cin, L_pad), lambda b: (b, 0, 0)),
                pl.BlockSpec((K, Cout, Cin), lambda b: (0, 0, 0)),
                pl.BlockSpec((Cout, 1), lambda b: (0, 0)),
            ],
            out_specs=pl.BlockSpec((1, Cout, L), lambda b: (b, 0, 0)),
        ),
        compiler_params=pltpu.CompilerParams(
            dimension_semantics=("parallel",),
            vmem_limit_bytes=32 << 20,
        ),
        cost_estimate=cost,
    )(x_pad, w_t, b2)


def weight_norm(v: jax.Array, g: jax.Array) -> jax.Array:
    """torch.nn.utils.weight_norm (dim=0) parameterization of a Conv1d weight."""
    norm = jnp.sqrt(jnp.sum(v * v, axis=(1, 2), keepdims=True))
    return g.reshape(-1, 1, 1) * v / norm


# ----------------------------------------------------------------------------
if __name__ == "__main__":
    key = jax.random.PRNGKey(0)
    k1, k2, k3, k4, k5 = jax.random.split(key, 5)

    # (1) Chomp1d, tiled lane-dense path. EACausalConvolutionBlock with
    #     kernel_size=3, dilation=1 -> padding=2: (B, C, L+2) -> (B, C, L).
    B, C, L, pad = 2, 8, 256, 2
    x = jax.random.normal(k1, (B, C, L + pad), dtype=jnp.float32)
    y = jax.block_until_ready(chomp1d(x, pad))
    assert y.shape == (B, C, L), y.shape
    assert jnp.array_equal(y, x[:, :, :-pad]), "chomp1d small mismatch"

    # (2) Chomp1d, multi-block grid (dilation=4 -> padding=8), checks the
    #     v7x grid-balancing / even lane-split logic.
    B2, C2, L2, pad2 = 2, 48, 1280, 8
    x2 = jax.random.normal(k2, (B2, C2, L2 + pad2), dtype=jnp.float32)
    y2 = jax.block_until_ready(chomp1d(x2, pad2))
    assert y2.shape == (B2, C2, L2), y2.shape
    assert jnp.array_equal(y2, x2[:, :, :-pad2]), "chomp1d tiled mismatch"

    # (3) Fused causal conv + chomp (feedback #1): the weight-normalised
    #     Conv1d + Chomp1d pair inside EAAugmentedConv1d, chomped tail never
    #     materialized.
    Cin, Cout, K, dil = 4, 8, 3, 1
    xc = jax.random.normal(k3, (B, Cin, L), dtype=jnp.float32)
    v = jax.random.normal(k4, (Cout, Cin, K), dtype=jnp.float32)
    g = jnp.abs(jax.random.normal(k5, (Cout,), dtype=jnp.float32)) + 0.5
    bias = jnp.linspace(-0.5, 0.5, Cout, dtype=jnp.float32)
    w = weight_norm(v, g)

    yc = jax.block_until_ready(causal_conv1d_chomped(xc, w, bias, dilation=dil))

    # Pure-JAX reference: left-pad + per-tap matmul == Conv1d(padding=(K-1)*d)
    # followed by Chomp1d((K-1)*d).
    xp = jnp.pad(xc, ((0, 0), (0, 0), ((K - 1) * dil, 0)))
    ref = bias[None, :, None] + sum(
        jnp.einsum("oc,bct->bot", w[:, :, j], xp[:, :, j * dil:j * dil + L],
                   precision=jax.lax.Precision.HIGHEST)
        for j in range(K))
    assert yc.shape == (B, Cout, L), yc.shape
    assert jnp.allclose(yc, ref, atol=1e-4, rtol=1e-4), \
        float(jnp.max(jnp.abs(yc - ref)))

    print("KERNEL_OK")
</pallas_src>

<mosaic_0001>
module attributes {stable_mosaic.version = 11 : i64} {
  func.func @_chomp_copy_kernel(%arg0: i32, %arg1: i32, %arg2: memref<16x256xf32, #tpu.memory_space<vmem>>, %arg3: memref<16x256xf32, #tpu.memory_space<vmem>>) attributes {dimension_semantics = [#tpu.dimension_semantics<parallel>, #tpu.dimension_semantics<parallel>], iteration_bounds = array<i64: 1, 1>, scalar_prefetch = 0 : i64, scratch_operands = 0 : i64, tpu.core_type = #tpu.core_type<tc>, window_params = [{transform_indices = @transform_0, window_bounds = array<i64: 16, 256>}, {transform_indices = @transform_1, window_bounds = array<i64: 16, 256>}]} {
    %c0 = arith.constant 0 : index
    %c0_0 = arith.constant 0 : index
    %0 = vector.load %arg2[%c0, %c0_0] : memref<16x256xf32, #tpu.memory_space<vmem>>, vector<16x256xf32>
    %c0_1 = arith.constant 0 : index
    %c0_2 = arith.constant 0 : index
    %1 = vector.load %arg3[%c0_1, %c0_2] : memref<16x256xf32, #tpu.memory_space<vmem>>, vector<16x256xf32>
    tpu.vector_store %arg3[%c0_1, %c0_2], %0 {strides = array<i32>} : memref<16x256xf32, #tpu.memory_space<vmem>>, vector<16x256xf32>,
    return
  }
  func.func @transform_0(%arg0: i32, %arg1: i32) -> (i32, i32) {
    %c0_i32 = arith.constant 0 : i32
    return %arg0, %arg1 : i32, i32
  }
  func.func @transform_1(%arg0: i32, %arg1: i32) -> (i32, i32) {
    %c0_i32 = arith.constant 0 : i32
    return %arg0, %arg1 : i32, i32
  }
}

</mosaic_0001>

<llo_original>
// kernel: tpu_custom_call.1
$region0: #{tpu_custom_call.1}
  #allocation0 [shape = 'u32[]', space=smem, size = 0x4, offset = 0x4, fixed_abs, tag = 'smem constant byte address 0x4 - core index']
  #allocation1 [shape = 'u32[144,128]{1,0:T(1,128)}', space=vmem, size = 0x12000, scoped, tag = 'internal scratch']
  %s0 = inlined_call_operand.hbm [shape: f32[16,258], index: 0, kind: input, shape index: {}]
  %s1 = inlined_call_operand.hbm [shape: f32[16,256], index: 1, kind: output, shape index: {}]
  %s2 = sld [smem:[#allocation0]]
  $region18: #{tpu_custom_call.1} parent=0
    _
  %s4 = ssub.s32 1, %s2
  %s5 = scalar_select 0, %s4, %s2
  $region1: #{tpu_custom_call.1} parent=0
    #allocation2 [shape = 'u8[16384]{0}', space=vmem, size = 0x4000, scoped, tag = 'input window, operand 0, single buffered']
    #allocation3 [shape = 's32[1]{0}', space=sflag, size = 0x4, scoped, tag = 'scoped memory for tpu_custom_call.1']
    #allocation4 [shape = 's32[1]{0}', space=sflag, size = 0x4, scoped, tag = 'scoped memory for tpu_custom_call.1']
    #allocation5 [shape = 'u8[16384]{0}', space=vmem, size = 0x4000, scoped, tag = 'output window, operand 0, single buffered']
    %6 = vsyncpa [#allocation3], 0
    %7 = vsyncpa [#allocation4], 0
    // Predicated region
    $region2: #{tpu_custom_call.1} parent=1 // pred_check
      _
    $region3: #{tpu_custom_call.1} parent=1 // pred_check_branch
      %9 = sbr.rel (0) target = $region5
    $region4: #{tpu_custom_call.1} parent=1 // pred_region
      %s11 = ssub.s32 512, 512
      %12 = vsyncadd [#allocation3], %s11
      %s13 = sshll.u32 [#allocation2], 4
      %s14 = int_to_ptr.vmem [resolvable:$true] %s13
      %19 = dma.hbm_to_vmem [thread:$0]  %s0, 512, %s14, [#allocation3], 384, 256, 16
    $region5: #{tpu_custom_call.1} parent=1 // pred_fallthru
      _
    // Predicated region
    $region6: #{tpu_custom_call.1} parent=1 // pred_check
      _
    $region7: #{tpu_custom_call.1} parent=1 // pred_check_branch
      %21 = sbr.rel (0) target = $region9
    $region8: #{tpu_custom_call.1} parent=1 // pred_region
      %22 = dma.done [#allocation3], 512
    $region9: #{tpu_custom_call.1} parent=1 // pred_fallthru
      _
    %v23 = vld [vmem:[#allocation2] sm:$0xff]
    %v24 = vld [vmem:[#allocation2 + $0x8] sm:$0xff]
    %v25 = vld [vmem:[#allocation2 + $0x10] sm:$0xff]
    %v26 = vld [vmem:[#allocation2 + $0x18] sm:$0xff]
    %27 = vst [vmem:[#allocation5] sm:$0xff] %v23
    %28 = vst [vmem:[#allocation5 + $0x8] sm:$0xff] %v24
    %29 = vst [vmem:[#allocation5 + $0x10] sm:$0xff] %v25
    %30 = vst [vmem:[#allocation5 + $0x18] sm:$0xff] %v26
    // Predicated region
    $region10: #{tpu_custom_call.1} parent=1 // pred_check
      _
    $region11: #{tpu_custom_call.1} parent=1 // pred_check_branch
      %32 = sbr.rel (0) target = $region13
    $region12: #{tpu_custom_call.1} parent=1 // pred_region
      %s34 = ssub.s32 512, 512
      %35 = vsyncadd [#allocation4], %s34
      %s36 = sshll.u32 [#allocation5], 4
      %s37 = int_to_ptr.vmem [resolvable:$true] %s36
      %42 = dma.vmem_to_hbm [thread:$0]  %s37, 512, %s1, [#allocation4], 256, 256, 16
    $region13: #{tpu_custom_call.1} parent=1 // pred_fallthru
      _
    // Predicated region
    $region14: #{tpu_custom_call.1} parent=1 // pred_check
      _
    $region15: #{tpu_custom_call.1} parent=1 // pred_check_branch
      %44 = sbr.rel (0) target = $region17
    $region16: #{tpu_custom_call.1} parent=1 // pred_region
      %45 = dma.done [#allocation4], 512
    $region17: #{tpu_custom_call.1} parent=1 // pred_fallthru
      _
    %46 = vsyncpa [#allocation3], 1
    %47 = vsyncpa [#allocation4], 1

</llo_original>
